<compile_context>
chip_gen: v7x
topology: tpu7x:2x2x1
jax: 0.10.0
libtpu: 0.0.40
codegen_flags: <defaults>
</compile_context>

<pallas_src>
import jax
import jax.numpy as jnp
from jax.experimental import pallas as pl
from jax.experimental.pallas import tpu as pltpu


# ---------------------------------------------------------------------------
# Problem sizes (small, consistent with the module's __init__)
# ---------------------------------------------------------------------------
BATCH = 8            # batch of latent states h
IN_DIM = 32          # dim of input latent h
CODE_DIM = 32        # params.code_dim
CONF_DIM = 16        # params.conf_dim
HIDDEN_DIM = 32      # params.hidden_dim
OUT_DIM = HIDDEN_DIM * 2            # 64
CAT_DIM = CODE_DIM * 2 + CONF_DIM   # 80  = input dim of state_mod
SLAB_DIM = OUT_DIM + CAT_DIM        # 144 = [next_h | tr | re | cf] lane-dense slab


# ---------------------------------------------------------------------------
# Fused kernel: one encoder matmul + folded state_mod MLP, single slab output
# ---------------------------------------------------------------------------
def causal_model_kernel(
    h_ref,        # [B, IN_DIM]
    w_enc_ref,    # [IN_DIM, CAT_DIM]    fused [w_tr | w_re | w_cf]
    w_comb_ref,   # [IN_DIM, HIDDEN_DIM] pre-folded W_enc @ W1
    b1_ref,       # [1, HIDDEN_DIM]
    w2_ref,       # [HIDDEN_DIM, OUT_DIM]
    b2_ref,       # [1, OUT_DIM]
    out_ref,      # [B, SLAB_DIM]        lane-dense output slab
):
    h = h_ref[...]

    # --- encoder / confounder stand-in projections: single fused MXU matmul ---
    enc = jnp.dot(h, w_enc_ref[...], preferred_element_type=jnp.float32)  # [B, 80]

    # --- state_mod with encoder folded into layer 1 ---
    # z = (h @ W_enc) @ W1 + b1  ==  h @ (W_enc @ W1) + b1
    z = jnp.dot(h, w_comb_ref[...], preferred_element_type=jnp.float32) + b1_ref[...]
    hdn = z * jax.nn.sigmoid(z)                       # SiLU (EUP transcendental)
    next_h = jnp.tanh(
        jnp.dot(hdn, w2_ref[...], preferred_element_type=jnp.float32) + b2_ref[...]
    )

    # --- single lane-dense store: [next_h | tr | re | cf] ---
    out_ref[...] = jnp.concatenate([next_h, enc], axis=-1).astype(out_ref.dtype)


def causal_model_forward(h, params):
    """Runs the fused CausalModel forward. Returns (next_h, enc_output)."""
    w_tr, w_re, w_cf, w1, b1, w2, b2 = params
    B = h.shape[0]

    # Trace-time (free) weight fusion / folding — constant-folded by XLA.
    w_enc = jnp.concatenate([w_tr, w_re, w_cf], axis=1)   # [IN_DIM, CAT_DIM]
    w_comb = w_enc @ w1                                    # [IN_DIM, HIDDEN_DIM]

    vmem = pl.BlockSpec(memory_space=pltpu.MemorySpace.VMEM)

    slab = pl.pallas_call(
        causal_model_kernel,
        out_shape=jax.ShapeDtypeStruct((B, SLAB_DIM), jnp.float32),
        in_specs=[vmem] * 6,
        out_specs=vmem,
    )(h, w_enc, w_comb, b1, w2, b2)

    # Static lane slices (free at trace time).
    next_h = slab[:, :OUT_DIM]
    tr = slab[:, OUT_DIM:OUT_DIM + CODE_DIM]
    re = slab[:, OUT_DIM + CODE_DIM:OUT_DIM + 2 * CODE_DIM]
    cf = slab[:, OUT_DIM + 2 * CODE_DIM:SLAB_DIM]

    enc_output = {
        "tr_features": tr,
        "re_features": re,
        "confounder_sample": cf,
    }
    return next_h, enc_output


# ---------------------------------------------------------------------------
# Deterministic parameter init (synthetic, no checkpoint)
# ---------------------------------------------------------------------------
def init_params(key):
    ks = jax.random.split(key, 7)
    scale = lambda fan_in: 1.0 / jnp.sqrt(jnp.float32(fan_in))
    w_tr = jax.random.normal(ks[0], (IN_DIM, CODE_DIM), jnp.float32) * scale(IN_DIM)
    w_re = jax.random.normal(ks[1], (IN_DIM, CODE_DIM), jnp.float32) * scale(IN_DIM)
    w_cf = jax.random.normal(ks[2], (IN_DIM, CONF_DIM), jnp.float32) * scale(IN_DIM)
    w1 = jax.random.normal(ks[3], (CAT_DIM, HIDDEN_DIM), jnp.float32) * scale(CAT_DIM)
    b1 = jax.random.normal(ks[4], (1, HIDDEN_DIM), jnp.float32) * 0.01
    w2 = jax.random.normal(ks[5], (HIDDEN_DIM, OUT_DIM), jnp.float32) * scale(HIDDEN_DIM)
    b2 = jax.random.normal(ks[6], (1, OUT_DIM), jnp.float32) * 0.01
    return w_tr, w_re, w_cf, w1, b1, w2, b2


def reference_forward(h, params):
    """Pure-JAX reference for correctness checking (un-folded formulation)."""
    w_tr, w_re, w_cf, w1, b1, w2, b2 = params
    tr = h @ w_tr
    re = h @ w_re
    cf = h @ w_cf
    z = jnp.concatenate([tr, re, cf], axis=-1) @ w1 + b1
    hdn = z * jax.nn.sigmoid(z)
    out = jnp.tanh(hdn @ w2 + b2)
    return out, tr, re, cf


if __name__ == "__main__":
    key = jax.random.PRNGKey(0)
    k_h, k_p = jax.random.split(key)
    h = jax.random.normal(k_h, (BATCH, IN_DIM), jnp.float32)
    params = init_params(k_p)

    next_h, enc_output = causal_model_forward(h, params)
    jax.block_until_ready(next_h)
    jax.block_until_ready(enc_output["tr_features"])

    # correctness check against pure-JAX reference
    # (next_h uses the pre-folded W_enc @ W1: identical math up to f32 rounding)
    ref_out, ref_tr, ref_re, ref_cf = reference_forward(h, params)
    assert jnp.allclose(next_h, ref_out, atol=1e-4, rtol=1e-4)
    assert jnp.allclose(enc_output["tr_features"], ref_tr, atol=1e-5, rtol=1e-5)
    assert jnp.allclose(enc_output["re_features"], ref_re, atol=1e-5, rtol=1e-5)
    assert jnp.allclose(enc_output["confounder_sample"], ref_cf, atol=1e-5, rtol=1e-5)

    print("KERNEL_OK")
</pallas_src>

<mosaic_0001>
module attributes {stable_mosaic.version = 11 : i64} {
  func.func @causal_model_kernel(%arg0: memref<8x32xf32, #tpu.memory_space<vmem>>, %arg1: memref<32x80xf32, #tpu.memory_space<vmem>>, %arg2: memref<32x32xf32, #tpu.memory_space<vmem>>, %arg3: memref<1x32xf32, #tpu.memory_space<vmem>>, %arg4: memref<32x64xf32, #tpu.memory_space<vmem>>, %arg5: memref<1x64xf32, #tpu.memory_space<vmem>>, %arg6: memref<8x144xf32, #tpu.memory_space<vmem>>) attributes {dimension_semantics = [], scalar_prefetch = 0 : i64, scratch_operands = 0 : i64, tpu.core_type = #tpu.core_type<tc>} {
    %c0 = arith.constant 0 : index
    %c0_0 = arith.constant 0 : index
    %0 = vector.load %arg0[%c0, %c0_0] : memref<8x32xf32, #tpu.memory_space<vmem>>, vector<8x32xf32>
    %c0_1 = arith.constant 0 : index
    %c0_2 = arith.constant 0 : index
    %1 = vector.load %arg1[%c0_1, %c0_2] : memref<32x80xf32, #tpu.memory_space<vmem>>, vector<32x80xf32>
    %cst = arith.constant dense<0.000000e+00> : vector<8x80xf32>
    %2 = tpu.matmul %0, %1, %cst {dimension_numbers = #tpu.dot_dimension_numbers<[1], [0], [0], [1], [0, 0, 1, 1], [], []>} : vector<8x32xf32>, vector<32x80xf32>, vector<8x80xf32> -> vector<8x80xf32>
    %c0_3 = arith.constant 0 : index
    %c0_4 = arith.constant 0 : index
    %3 = vector.load %arg2[%c0_3, %c0_4] : memref<32x32xf32, #tpu.memory_space<vmem>>, vector<32x32xf32>
    %cst_5 = arith.constant dense<0.000000e+00> : vector<8x32xf32>
    %4 = tpu.matmul %0, %3, %cst_5 {dimension_numbers = #tpu.dot_dimension_numbers<[1], [0], [0], [1], [0, 0, 1, 1], [], []>} : vector<8x32xf32>, vector<32x32xf32>, vector<8x32xf32> -> vector<8x32xf32>
    %c0_6 = arith.constant 0 : index
    %c0_7 = arith.constant 0 : index
    %5 = vector.load %arg3[%c0_6, %c0_7] : memref<1x32xf32, #tpu.memory_space<vmem>>, vector<1x32xf32>
    %6 = vector.broadcast %5 : vector<1x32xf32> to vector<8x32xf32>
    %7 = arith.addf %4, %6 : vector<8x32xf32>
    %8 = arith.negf %7 : vector<8x32xf32>
    %9 = math.exp %8 : vector<8x32xf32>
    %cst_8 = arith.constant 1.000000e+00 : f32
    %10 = vector.broadcast %cst_8 : f32 to vector<8x32xf32>
    %11 = arith.addf %10, %9 : vector<8x32xf32>
    %12 = arith.divf %10, %11 : vector<8x32xf32>
    %13 = arith.mulf %7, %12 : vector<8x32xf32>
    %c0_9 = arith.constant 0 : index
    %c0_10 = arith.constant 0 : index
    %14 = vector.load %arg4[%c0_9, %c0_10] : memref<32x64xf32, #tpu.memory_space<vmem>>, vector<32x64xf32>
    %cst_11 = arith.constant dense<0.000000e+00> : vector<8x64xf32>
    %15 = tpu.matmul %13, %14, %cst_11 {dimension_numbers = #tpu.dot_dimension_numbers<[1], [0], [0], [1], [0, 0, 1, 1], [], []>} : vector<8x32xf32>, vector<32x64xf32>, vector<8x64xf32> -> vector<8x64xf32>
    %c0_12 = arith.constant 0 : index
    %c0_13 = arith.constant 0 : index
    %16 = vector.load %arg5[%c0_12, %c0_13] : memref<1x64xf32, #tpu.memory_space<vmem>>, vector<1x64xf32>
    %17 = vector.broadcast %16 : vector<1x64xf32> to vector<8x64xf32>
    %18 = arith.addf %15, %17 : vector<8x64xf32>
    %19 = math.tanh %18 : vector<8x64xf32>
    %20 = tpu.concatenate %19, %2 in 1 : vector<8x64xf32>, vector<8x80xf32> -> vector<8x144xf32>
    %c0_14 = arith.constant 0 : index
    %c0_15 = arith.constant 0 : index
    %21 = vector.load %arg6[%c0_14, %c0_15] : memref<8x144xf32, #tpu.memory_space<vmem>>, vector<8x144xf32>
    tpu.vector_store %arg6[%c0_14, %c0_15], %20 {strides = array<i32>} : memref<8x144xf32, #tpu.memory_space<vmem>>, vector<8x144xf32>,
    return
  }
}

</mosaic_0001>

<llo_original>
// kernel: tpu_custom_call.1
$region0: #{tpu_custom_call.1}
  #allocation0 [shape = 'u32[]', space=smem, size = 0x4, offset = 0x4, fixed_abs, tag = 'smem constant byte address 0x4 - core index']
  #allocation1 [shape = 'u32[144,128]{1,0:T(1,128)}', space=vmem, size = 0x12000, scoped, tag = 'internal scratch']
  %s0 = inlined_call_operand.hbm [shape: f32[8,32], index: 0, kind: input, shape index: {}]
  %s1 = inlined_call_operand.hbm [shape: f32[32,80], index: 1, kind: input, shape index: {}]
  %s2 = inlined_call_operand.hbm [shape: f32[32,32], index: 2, kind: input, shape index: {}]
  %s3 = inlined_call_operand.vmem [shape: f32[1,32], index: 3, kind: input, shape index: {}]
  %s4 = inlined_call_operand.hbm [shape: f32[32,64], index: 4, kind: input, shape index: {}]
  %s5 = inlined_call_operand.vmem [shape: f32[1,64], index: 5, kind: input, shape index: {}]
  %s6 = inlined_call_operand.hbm [shape: f32[8,144], index: 6, kind: output, shape index: {}]
  %s7 = sld [smem:[#allocation0]]
  $region50: #{tpu_custom_call.1} parent=0
    _
  %s9 = ssub.s32 1, %s7
  %s10 = scalar_select 0, %s9, %s7
  $region1: #{tpu_custom_call.1} parent=0
    #allocation2 [shape = 'u8[4096]{0}', space=vmem, size = 0x1000, scoped, tag = 'input window, operand 0, single buffered']
    #allocation3 [shape = 's32[1]{0}', space=sflag, size = 0x4, scoped, tag = 'scoped memory for tpu_custom_call.1']
    #allocation4 [shape = 's32[1]{0}', space=sflag, size = 0x4, scoped, tag = 'scoped memory for tpu_custom_call.1']
    #allocation5 [shape = 'u8[16384]{0}', space=vmem, size = 0x4000, scoped, tag = 'input window, operand 1, single buffered']
    #allocation6 [shape = 's32[1]{0}', space=sflag, size = 0x4, scoped, tag = 'scoped memory for tpu_custom_call.1']
    #allocation7 [shape = 'u8[16384]{0}', space=vmem, size = 0x4000, scoped, tag = 'input window, operand 2, single buffered']
    #allocation8 [shape = 'u8[16384]{0}', space=vmem, size = 0x4000, scoped, tag = 'input window, operand 4, single buffered']
    #allocation9 [shape = 's32[1]{0}', space=sflag, size = 0x4, scoped, tag = 'scoped memory for tpu_custom_call.1']
    #allocation10 [shape = 'u8[8192]{0}', space=vmem, size = 0x2000, scoped, tag = 'output window, operand 0, single buffered']
    %11 = vsyncpa [#allocation3], 0
    %12 = vsyncpa [#allocation6], 0
    %13 = vsyncpa [#allocation9], 0
    %14 = vsyncpa [#allocation4], 0
    // Predicated region
    $region2: #{tpu_custom_call.1} parent=1 // pred_check
      _
    $region3: #{tpu_custom_call.1} parent=1 // pred_check_branch
      %16 = sbr.rel (0) target = $region5
    $region4: #{tpu_custom_call.1} parent=1 // pred_region
      %s18 = ssub.s32 128, 128
      %19 = vsyncadd [#allocation3], %s18
      %s21 = sshll.u32 [#allocation2], 4
      %s22 = int_to_ptr.vmem [resolvable:$true] %s21
      %24 = dma.hbm_to_vmem [thread:$0]  %s0, 128, %s22, [#allocation3]
    $region5: #{tpu_custom_call.1} parent=1 // pred_fallthru
      _
    // Predicated region
    $region6: #{tpu_custom_call.1} parent=1 // pred_check
      _
    $region7: #{tpu_custom_call.1} parent=1 // pred_check_branch
      %26 = sbr.rel (0) target = $region9
    $region8: #{tpu_custom_call.1} parent=1 // pred_region
      %s28 = ssub.s32 512, 512
      %29 = vsyncadd [#allocation6], %s28
      %s30 = sshll.u32 [#allocation5], 4
      %s31 = int_to_ptr.vmem [resolvable:$true] %s30
      %36 = dma.hbm_to_vmem [thread:$0]  %s1, 512, %s31, [#allocation6], 128, 128, 8
    $region9: #{tpu_custom_call.1} parent=1 // pred_fallthru
      _
    // Predicated region
    $region10: #{tpu_custom_call.1} parent=1 // pred_check
      _
    $region11: #{tpu_custom_call.1} parent=1 // pred_check_branch
      %38 = sbr.rel (0) target = $region13
    $region12: #{tpu_custom_call.1} parent=1 // pred_region
      %s40 = ssub.s32 512, 512
      %41 = vsyncadd [#allocation6], %s40
      %s42 = sshll.u32 [#allocation7], 4
      %s43 = int_to_ptr.vmem [resolvable:$true] %s42
      %48 = dma.hbm_to_vmem [thread:$0]  %s2, 512, %s43, [#allocation6], 128, 128, 8
    $region13: #{tpu_custom_call.1} parent=1 // pred_fallthru
      _
    // Predicated region
    $region14: #{tpu_custom_call.1} parent=1 // pred_check
      _
    $region15: #{tpu_custom_call.1} parent=1 // pred_check_branch
      %50 = sbr.rel (0) target = $region17
    $region16: #{tpu_custom_call.1} parent=1 // pred_region
      _
    $region17: #{tpu_custom_call.1} parent=1 // pred_fallthru
      _
    // Predicated region
    $region18: #{tpu_custom_call.1} parent=1 // pred_check
      _
    $region19: #{tpu_custom_call.1} parent=1 // pred_check_branch
      %52 = sbr.rel (0) target = $region21
    $region20: #{tpu_custom_call.1} parent=1 // pred_region
      %s54 = ssub.s32 512, 512
      %55 = vsyncadd [#allocation9], %s54
      %s56 = sshll.u32 [#allocation8], 4
      %s57 = int_to_ptr.vmem [resolvable:$true] %s56
      %62 = dma.hbm_to_vmem [thread:$0]  %s4, 512, %s57, [#allocation9], 128, 128, 8
    $region21: #{tpu_custom_call.1} parent=1 // pred_fallthru
      _
    // Predicated region
    $region22: #{tpu_custom_call.1} parent=1 // pred_check
      _
    $region23: #{tpu_custom_call.1} parent=1 // pred_check_branch
      %64 = sbr.rel (0) target = $region25
    $region24: #{tpu_custom_call.1} parent=1 // pred_region
      _
    $region25: #{tpu_custom_call.1} parent=1 // pred_fallthru
      _
    // Predicated region
    $region26: #{tpu_custom_call.1} parent=1 // pred_check
      _
    $region27: #{tpu_custom_call.1} parent=1 // pred_check_branch
      %66 = sbr.rel (0) target = $region29
    $region28: #{tpu_custom_call.1} parent=1 // pred_region
      %67 = dma.done [#allocation3], 128
    $region29: #{tpu_custom_call.1} parent=1 // pred_fallthru
      _
    // Predicated region
    $region30: #{tpu_custom_call.1} parent=1 // pred_check
      _
    $region31: #{tpu_custom_call.1} parent=1 // pred_check_branch
      %69 = sbr.rel (0) target = $region33
    $region32: #{tpu_custom_call.1} parent=1 // pred_region
      %70 = dma.done [#allocation6], 512
    $region33: #{tpu_custom_call.1} parent=1 // pred_fallthru
      _
    // Predicated region
    $region34: #{tpu_custom_call.1} parent=1 // pred_check
      _
    $region35: #{tpu_custom_call.1} parent=1 // pred_check_branch
      %72 = sbr.rel (0) target = $region37
    $region36: #{tpu_custom_call.1} parent=1 // pred_region
      %73 = dma.done [#allocation6], 512
    $region37: #{tpu_custom_call.1} parent=1 // pred_fallthru
      _
    // Predicated region
    $region38: #{tpu_custom_call.1} parent=1 // pred_check
      _
    $region39: #{tpu_custom_call.1} parent=1 // pred_check_branch
      %75 = sbr.rel (0) target = $region41
    $region40: #{tpu_custom_call.1} parent=1 // pred_region
      %76 = dma.done [#allocation9], 512
    $region41: #{tpu_custom_call.1} parent=1 // pred_fallthru
      _
    %v77 = vld [vmem:[#allocation2] sm:$0xff]
    %v78 = vld [vmem:[#allocation5] sm:$0xff]
    %v79 = vld [vmem:[#allocation5 + $0x8] sm:$0xff]
    %v80 = vld [vmem:[#allocation5 + $0x10] sm:$0xff]
    %v81 = vld [vmem:[#allocation5 + $0x18] sm:$0xff]
    %vm82 = vcmask 261120
    %v84 = vsel %vm82, %v77, 0
    %86 = vmatprep.subr.mxu0 0.0
    %87 = vmatpush1.msra.mxu0 %v78
    %88 = vmatprep.subr.mxu0 0.0
    %89 = vmatpush1.msra.mxu0 %v79
    %90 = vmatprep.subr.mxu0 0.0
    %91 = vmatpush1.msra.mxu0 %v80
    %92 = vmatprep.subr.mxu0 0.0
    %93 = vmatpush1.msra.mxu0 %v81
    %94 = vmatprep.subr.mxu0 0.0
    %95 = vmatpush1.msra.mxu0 0.0
    %96 = vmatprep.subr.mxu0 0.0
    %97 = vmatpush1.msra.mxu0 0.0
    %98 = vmatprep.subr.mxu0 0.0
    %99 = vmatpush1.msra.mxu0 0.0
    %100 = vmatprep.subr.mxu0 0.0
    %101 = vmatpush1.msra.mxu0 0.0
    %102 = vmatprep.subr.mxu0 0.0
    %103 = vmatpush1.msra.mxu0 0.0
    %104 = vmatprep.subr.mxu0 0.0
    %105 = vmatpush1.msra.mxu0 0.0
    %106 = vmatprep.subr.mxu0 0.0
    %107 = vmatpush1.msra.mxu0 0.0
    %108 = vmatprep.subr.mxu0 0.0
    %109 = vmatpush1.msra.mxu0 0.0
    %110 = vmatprep.subr.mxu0 0.0
    %111 = vmatpush1.msra.mxu0 0.0
    %112 = vmatprep.subr.mxu0 0.0
    %113 = vmatpush1.msra.mxu0 0.0
    %114 = vmatprep.subr.mxu0 0.0
    %115 = vmatpush1.msra.mxu0 0.0
    %116 = vmatprep.subr.mxu0 0.0
    %117 = vmatpush1.msra.mxu0 0.0
    %118 = vmatprep.subr.mxu0 0.0
    %119 = vmatpush1.msra.mxu0 0.0
    %120 = vmatprep.subr.mxu0 0.0
    %121 = vmatpush1.msra.mxu0 0.0
    %122 = vmatprep.subr.mxu0 0.0
    %123 = vmatpush1.msra.mxu0 0.0
    %124 = vmatprep.subr.mxu0 0.0
    %125 = vmatpush1.msra.mxu0 0.0
    %126 = vmatprep.subr.mxu0 0.0
    %127 = vmatpush1.msra.mxu0 0.0
    %128 = vmatprep.subr.mxu0 0.0
    %129 = vmatpush1.msra.mxu0 0.0
    %130 = vmatprep.subr.mxu0 0.0
    %131 = vmatpush1.msra.mxu0 0.0
    %132 = vmatprep.subr.mxu0 0.0
    %133 = vmatpush1.msra.mxu0 0.0
    %134 = vmatprep.subr.mxu0 0.0
    %135 = vmatpush1.msra.mxu0 0.0
    %136 = vmatprep.subr.mxu0 0.0
    %137 = vmatpush1.msra.mxu0 0.0
    %138 = vmatprep.subr.mxu0 0.0
    %139 = vmatpush1.msra.mxu0 0.0
    %140 = vmatprep.subr.mxu0 0.0
    %141 = vmatpush1.msra.mxu0 0.0
    %142 = vmatprep.subr.mxu0 0.0
    %143 = vmatpush1.msra.mxu0 0.0
    %144 = vmatprep.subr.mxu0 0.0
    %145 = vmatpush1.msra.mxu0 0.0
    %146 = vmatprep.subr.mxu0 0.0
    %147 = vmatpush1.msra.mxu0 0.0
    %148 = vmatprep.subr.mxu0 0.0
    %149 = vmatpush1.msra.mxu0 0.0
    %150 = vmatprep.mubr.f32.mxu0 0.0
    %151 = vmatmul.mubr.f32.gmra.mrb[0].mxu0 %v84
    %v152 = vpop.f32.mrb[0].mxu0
    %v153 = vadd.f32 0.0, %v152
    %v154 = vpop.f32.mrb[0].mxu0
    %155 = vdwg.mxu0
    %v156 = vld [vmem:[#allocation7] sm:$0xff]
    %v157 = vld [vmem:[#allocation7 + $0x8] sm:$0xff]
    %v158 = vld [vmem:[#allocation7 + $0x10] sm:$0xff]
    %v159 = vld [vmem:[#allocation7 + $0x18] sm:$0xff]
    %v160 = vld [vmem:[%s3] sm:$0x1]
    %v162 = vlaneseq
    %v163 = vshrl.u32 %v162, 7
    %v164 = vsub.s32 0, %v163
    %v165 = vrot.slane %v160, %v164
    %167 = vmatprep.subr.mxu0 0.0
    %168 = vmatpush1.msra.mxu0 %v156
    %169 = vmatprep.subr.mxu0 0.0
    %170 = vmatpush1.msra.mxu0 %v157
    %171 = vmatprep.subr.mxu0 0.0
    %172 = vmatpush1.msra.mxu0 %v158
    %173 = vmatprep.subr.mxu0 0.0
    %174 = vmatpush1.msra.mxu0 %v159
    %175 = vmatprep.subr.mxu0 0.0
    %176 = vmatpush1.msra.mxu0 0.0
    %177 = vmatprep.subr.mxu0 0.0
    %178 = vmatpush1.msra.mxu0 0.0
    %179 = vmatprep.subr.mxu0 0.0
    %180 = vmatpush1.msra.mxu0 0.0
    %181 = vmatprep.subr.mxu0 0.0
    %182 = vmatpush1.msra.mxu0 0.0
    %183 = vmatprep.subr.mxu0 0.0
    %184 = vmatpush1.msra.mxu0 0.0
    %185 = vmatprep.subr.mxu0 0.0
    %186 = vmatpush1.msra.mxu0 0.0
    %187 = vmatprep.subr.mxu0 0.0
    %188 = vmatpush1.msra.mxu0 0.0
    %189 = vmatprep.subr.mxu0 0.0
    %190 = vmatpush1.msra.mxu0 0.0
    %191 = vmatprep.subr.mxu0 0.0
    %192 = vmatpush1.msra.mxu0 0.0
    %193 = vmatprep.subr.mxu0 0.0
    %194 = vmatpush1.msra.mxu0 0.0
    %195 = vmatprep.subr.mxu0 0.0
    %196 = vmatpush1.msra.mxu0 0.0
    %197 = vmatprep.subr.mxu0 0.0
    %198 = vmatpush1.msra.mxu0 0.0
    %199 = vmatprep.subr.mxu0 0.0
    %200 = vmatpush1.msra.mxu0 0.0
    %201 = vmatprep.subr.mxu0 0.0
    %202 = vmatpush1.msra.mxu0 0.0
    %203 = vmatprep.subr.mxu0 0.0
    %204 = vmatpush1.msra.mxu0 0.0
    %205 = vmatprep.subr.mxu0 0.0
    %206 = vmatpush1.msra.mxu0 0.0
    %207 = vmatprep.subr.mxu0 0.0
    %208 = vmatpush1.msra.mxu0 0.0
    %209 = vmatprep.subr.mxu0 0.0
    %210 = vmatpush1.msra.mxu0 0.0
    %211 = vmatprep.subr.mxu0 0.0
    %212 = vmatpush1.msra.mxu0 0.0
    %213 = vmatprep.subr.mxu0 0.0
    %214 = vmatpush1.msra.mxu0 0.0
    %215 = vmatprep.subr.mxu0 0.0
    %216 = vmatpush1.msra.mxu0 0.0
    %217 = vmatprep.subr.mxu0 0.0
    %218 = vmatpush1.msra.mxu0 0.0
    %219 = vmatprep.subr.mxu0 0.0
    %220 = vmatpush1.msra.mxu0 0.0
    %221 = vmatprep.subr.mxu0 0.0
    %222 = vmatpush1.msra.mxu0 0.0
    %223 = vmatprep.subr.mxu0 0.0
    %224 = vmatpush1.msra.mxu0 0.0
    %225 = vmatprep.subr.mxu0 0.0
    %226 = vmatpush1.msra.mxu0 0.0
    %227 = vmatprep.subr.mxu0 0.0
    %228 = vmatpush1.msra.mxu0 0.0
    %229 = vmatprep.subr.mxu0 0.0
    %230 = vmatpush1.msra.mxu0 0.0
    %231 = vmatprep.mubr.f32.mxu0 0.0
    %232 = vmatmul.mubr.f32.gmra.mrb[0].mxu0 %v84
    %v233 = vpop.f32.mrb[0].mxu0
    %v234 = vadd.f32 %v165, %v233
    %v235 = vpop.f32.mrb[0].mxu0
    %236 = vdwg.mxu0
    %v237 = vxor.u32 %v234, 2147483648
    %v238 = vmul.f32 %v237, 1.442695
    %v239 = vpow.pop %v238
    %v240 = vadd.f32 %v239, 1.0
    %v241 = vrcp.pop %v240
    %v242 = vmul.f32 1.0, %v241
    %v243 = vmul.f32 %v234, %v242
    %v244 = vld [vmem:[#allocation8] sm:$0xff]
    %v245 = vld [vmem:[#allocation8 + $0x8] sm:$0xff]
    %v246 = vld [vmem:[#allocation8 + $0x10] sm:$0xff]
    %v247 = vld [vmem:[#allocation8 + $0x18] sm:$0xff]
    %v248 = vld [vmem:[%s5] sm:$0x1]
    %v250 = vlaneseq
    %v251 = vshrl.u32 %v250, 7
    %v252 = vsub.s32 0, %v251
    %v253 = vrot.slane %v248, %v252
    %v256 = vsel %vm82, %v243, 0
    %258 = vmatprep.subr.mxu0 0.0
    %259 = vmatpush1.msra.mxu0 %v244
    %260 = vmatprep.subr.mxu0 0.0
    %261 = vmatpush1.msra.mxu0 %v245
    %262 = vmatprep.subr.mxu0 0.0
    %263 = vmatpush1.msra.mxu0 %v246
    %264 = vmatprep.subr.mxu0 0.0
    %265 = vmatpush1.msra.mxu0 %v247
    %266 = vmatprep.subr.mxu0 0.0
    %267 = vmatpush1.msra.mxu0 0.0
    %268 = vmatprep.subr.mxu0 0.0
    %269 = vmatpush1.msra.mxu0 0.0
    %270 = vmatprep.subr.mxu0 0.0
    %271 = vmatpush1.msra.mxu0 0.0
    %272 = vmatprep.subr.mxu0 0.0
    %273 = vmatpush1.msra.mxu0 0.0
    %274 = vmatprep.subr.mxu0 0.0
    %275 = vmatpush1.msra.mxu0 0.0
    %276 = vmatprep.subr.mxu0 0.0
    %277 = vmatpush1.msra.mxu0 0.0
    %278 = vmatprep.subr.mxu0 0.0
    %279 = vmatpush1.msra.mxu0 0.0
    %280 = vmatprep.subr.mxu0 0.0
    %281 = vmatpush1.msra.mxu0 0.0
    %282 = vmatprep.subr.mxu0 0.0
    %283 = vmatpush1.msra.mxu0 0.0
    %284 = vmatprep.subr.mxu0 0.0
    %285 = vmatpush1.msra.mxu0 0.0
    %286 = vmatprep.subr.mxu0 0.0
    %287 = vmatpush1.msra.mxu0 0.0
    %288 = vmatprep.subr.mxu0 0.0
    %289 = vmatpush1.msra.mxu0 0.0
    %290 = vmatprep.subr.mxu0 0.0
    %291 = vmatpush1.msra.mxu0 0.0
    %292 = vmatprep.subr.mxu0 0.0
    %293 = vmatpush1.msra.mxu0 0.0
    %294 = vmatprep.subr.mxu0 0.0
    %295 = vmatpush1.msra.mxu0 0.0
    %296 = vmatprep.subr.mxu0 0.0
    %297 = vmatpush1.msra.mxu0 0.0
    %298 = vmatprep.subr.mxu0 0.0
    %299 = vmatpush1.msra.mxu0 0.0
    %300 = vmatprep.subr.mxu0 0.0
    %301 = vmatpush1.msra.mxu0 0.0
    %302 = vmatprep.subr.mxu0 0.0
    %303 = vmatpush1.msra.mxu0 0.0
    %304 = vmatprep.subr.mxu0 0.0
    %305 = vmatpush1.msra.mxu0 0.0
    %306 = vmatprep.subr.mxu0 0.0
    %307 = vmatpush1.msra.mxu0 0.0
    %308 = vmatprep.subr.mxu0 0.0
    %309 = vmatpush1.msra.mxu0 0.0
    %310 = vmatprep.subr.mxu0 0.0
    %311 = vmatpush1.msra.mxu0 0.0
    %312 = vmatprep.subr.mxu0 0.0
    %313 = vmatpush1.msra.mxu0 0.0
    %314 = vmatprep.subr.mxu0 0.0
    %315 = vmatpush1.msra.mxu0 0.0
    %316 = vmatprep.subr.mxu0 0.0
    %317 = vmatpush1.msra.mxu0 0.0
    %318 = vmatprep.subr.mxu0 0.0
    %319 = vmatpush1.msra.mxu0 0.0
    %320 = vmatprep.subr.mxu0 0.0
    %321 = vmatpush1.msra.mxu0 0.0
    %322 = vmatprep.mubr.f32.mxu0 0.0
    %323 = vmatmul.mubr.f32.gmra.mrb[0].mxu0 %v256
    %v324 = vpop.f32.mrb[0].mxu0
    %v325 = vadd.f32 %v253, %v324
    %v326 = vpop.f32.mrb[0].mxu0
    %327 = vdwg.mxu0
    %v328 = vtanh.pop %v325
    %330 = vrot.lane.b32.xlu0 %v153, 64
    %v331 = vpop.permute.xlu0 %330
    %vm333 = vcmask 523264
    %v334 = vsel %vm333, %v328, %v331
    %335 = vst [vmem:[#allocation10] sm:$0xff] %v334
    %vm336 = vcmask 130048
    %337 = vst.msk [vmem:[#allocation10 + $0x8] sm:$0xff] %vm336, %v331
    // Predicated region
    $region42: #{tpu_custom_call.1} parent=1 // pred_check
      _
    $region43: #{tpu_custom_call.1} parent=1 // pred_check_branch
      %339 = sbr.rel (0) target = $region45
    $region44: #{tpu_custom_call.1} parent=1 // pred_region
      %s341 = ssub.s32 256, 256
      %342 = vsyncadd [#allocation4], %s341
      %s344 = sshll.u32 [#allocation10], 4
      %s345 = int_to_ptr.vmem [resolvable:$true] %s344
      %347 = dma.vmem_to_hbm [thread:$0]  %s345, 256, %s6, [#allocation4]
    $region45: #{tpu_custom_call.1} parent=1 // pred_fallthru
      _
    // Predicated region
    $region46: #{tpu_custom_call.1} parent=1 // pred_check
      _
    $region47: #{tpu_custom_call.1} parent=1 // pred_check_branch
      %349 = sbr.rel (0) target = $region49
    $region48: #{tpu_custom_call.1} parent=1 // pred_region
      %350 = dma.done [#allocation4], 256
    $region49: #{tpu_custom_call.1} parent=1 // pred_fallthru
      _
    %351 = vsyncpa [#allocation3], 1
    %352 = vsyncpa [#allocation6], 1
    %353 = vsyncpa [#allocation9], 1
    %354 = vsyncpa [#allocation4], 1

</llo_original>
